<compile_context>
chip_gen: v5e
topology: v5e:2x2
jax: 0.10.0
libtpu: 0.0.40
codegen_flags: <defaults>
</compile_context>

<pallas_src>
import jax
import jax.numpy as jnp
from jax.experimental import pallas as pl
from jax.experimental.pallas import tpu as pltpu


def _round_up(x, m):
    return (x + m - 1) // m * m


def project_kernel(x_ref, w1_ref, b1_ref, w2_ref, o_ref, h_ref):
    # Grid = (row tiles, vocab tiles); vocab is the inner "arbitrary" axis so
    # the h scratch computed at vocab index 0 stays valid for the whole row.
    @pl.when(pl.program_id(1) == 0)
    def _():
        # First linear + bias + leaky_relu (PyTorch default slope 0.01),
        # computed once per row tile in f32.
        h = jnp.dot(x_ref[...], w1_ref[...], preferred_element_type=jnp.float32)
        h = h + b1_ref[...].astype(jnp.float32)
        h = jnp.where(h > 0, h, 0.01 * h)
        h_ref[...] = h.astype(h_ref.dtype)

    # Second (bias-free) linear against the current vocab tile of w2.
    o_ref[...] = jnp.dot(
        h_ref[...], w2_ref[...], preferred_element_type=jnp.float32
    ).astype(o_ref.dtype)


def project_forward(hidden, w1, b1, w2, *, tm=256, tn=512):
    """hidden: (..., n_hidden); w1: (n_hidden, n_emb); b1: (n_emb,); w2: (n_emb, vocab)."""
    orig_shape = hidden.shape
    n_hidden = orig_shape[-1]
    n_emb = w1.shape[1]
    vocab = w2.shape[1]
    out_dtype = hidden.dtype

    x = hidden.reshape(-1, n_hidden)
    M = x.shape[0]

    # --- choose tiles, pad ragged dims (no divisibility asserts) -----------
    tm_eff = min(tm, _round_up(M, 8))          # sublane-aligned row tile
    M_pad = _round_up(M, tm_eff)
    tn_eff = min(tn, _round_up(vocab, 128))    # lane-aligned vocab tile
    vocab_pad = _round_up(vocab, tn_eff)

    if M_pad != M:
        x = jnp.pad(x, ((0, M_pad - M), (0, 0)))
    w2_p = w2 if vocab_pad == vocab else jnp.pad(w2, ((0, 0), (0, vocab_pad - vocab)))
    b1_2d = b1.reshape(1, n_emb)

    n_row_tiles = M_pad // tm_eff
    n_vocab_tiles = vocab_pad // tn_eff

    # --- VMEM budget (double-buffered streaming tiles + resident weights) --
    bpe_x = jnp.dtype(x.dtype).itemsize
    bpe_w1 = jnp.dtype(w1.dtype).itemsize
    bpe_w2 = jnp.dtype(w2_p.dtype).itemsize
    bpe_o = jnp.dtype(out_dtype).itemsize
    vmem_bytes = (
        2 * tm_eff * n_hidden * bpe_x          # x tiles (double-buffered)
        + 2 * n_emb * tn_eff * bpe_w2          # w2 tiles (double-buffered)
        + 2 * tm_eff * tn_eff * bpe_o          # out tiles (double-buffered)
        + 2 * (n_hidden * n_emb * bpe_w1 + n_emb * bpe_w1)  # w1 + b1
        + tm_eff * n_emb * bpe_w2              # h scratch
        + (4 << 20)                            # headroom for compiler scratch
    )
    vmem_limit = int(min(max(vmem_bytes, 32 << 20), 64 << 20))  # v7x-safe cap

    cost = pl.CostEstimate(
        flops=2 * M_pad * n_hidden * n_emb + 2 * M_pad * n_emb * vocab_pad,
        transcendentals=0,
        bytes_accessed=(
            M_pad * n_hidden * bpe_x
            + n_hidden * n_emb * bpe_w1
            + n_emb * bpe_w1
            + n_row_tiles * n_emb * vocab_pad * bpe_w2   # w2 re-streamed per row tile
            + M_pad * vocab_pad * bpe_o
        ),
    )

    out = pl.pallas_call(
        project_kernel,
        out_shape=jax.ShapeDtypeStruct((M_pad, vocab_pad), out_dtype),
        grid_spec=pltpu.PrefetchScalarGridSpec(
            num_scalar_prefetch=0,
            grid=(n_row_tiles, n_vocab_tiles),
            in_specs=[
                pl.BlockSpec((tm_eff, n_hidden), lambda i, j: (i, 0)),
                pl.BlockSpec((n_hidden, n_emb), lambda i, j: (0, 0)),
                pl.BlockSpec((1, n_emb), lambda i, j: (0, 0)),
                pl.BlockSpec((n_emb, tn_eff), lambda i, j: (0, j)),
            ],
            out_specs=pl.BlockSpec((tm_eff, tn_eff), lambda i, j: (i, j)),
            scratch_shapes=[pltpu.VMEM((tm_eff, n_emb), w2_p.dtype)],
        ),
        compiler_params=pltpu.CompilerParams(
            dimension_semantics=("parallel", "arbitrary"),
            vmem_limit_bytes=vmem_limit,
        ),
        cost_estimate=cost,
    )(x, w1, b1_2d, w2_p)

    out = out[:M, :vocab]
    return out.reshape(*orig_shape[:-1], vocab)


if __name__ == "__main__":
    # Small shapes consistent with the module's forward.
    batch, seq = 2, 8
    n_hidden, n_embedding, vocabulary_size = 32, 64, 128

    key = jax.random.PRNGKey(0)
    k_x, k_w1, k_b1, k_w2 = jax.random.split(key, 4)

    hidden = jax.random.normal(k_x, (batch, seq, n_hidden), dtype=jnp.float32)

    # Parameters stored as (in, out), i.e. already transposed vs. nn.Linear.weight.
    w1 = jax.random.normal(k_w1, (n_hidden, n_embedding), jnp.float32) * (
        1.0 / jnp.sqrt(n_hidden)
    )
    b1 = jax.random.normal(k_b1, (n_embedding,), jnp.float32) * 0.01
    w2 = jax.random.normal(k_w2, (n_embedding, vocabulary_size), jnp.float32) * (
        1.0 / jnp.sqrt(n_embedding)
    )

    out = project_forward(hidden, w1, b1, w2)
    out = jax.block_until_ready(out)

    # Pure-JAX reference.
    h_ref = hidden.reshape(-1, n_hidden) @ w1 + b1
    h_ref = jnp.where(h_ref > 0, h_ref, 0.01 * h_ref)
    ref = (h_ref @ w2).reshape(batch, seq, vocabulary_size)

    assert out.shape == (batch, seq, vocabulary_size)
    assert jnp.allclose(out, ref, atol=1e-4, rtol=1e-4)

    print("KERNEL_OK")
</pallas_src>

<mosaic_0001>
module attributes {stable_mosaic.version = 11 : i64} {
  func.func @project_kernel(%arg0: i32, %arg1: i32, %arg2: memref<16x32xf32, #tpu.memory_space<vmem>>, %arg3: memref<32x64xf32, #tpu.memory_space<vmem>>, %arg4: memref<1x64xf32, #tpu.memory_space<vmem>>, %arg5: memref<64x128xf32, #tpu.memory_space<vmem>>, %arg6: memref<16x128xf32, #tpu.memory_space<vmem>>, %arg7: memref<16x64xf32, #tpu.memory_space<vmem>>) attributes {dimension_semantics = [#tpu.dimension_semantics<parallel>, #tpu.dimension_semantics<arbitrary>], iteration_bounds = array<i64: 1, 1>, scalar_prefetch = 0 : i64, scratch_operands = 1 : i64, tpu.core_type = #tpu.core_type<tc>, window_params = [{transform_indices = @transform_0, window_bounds = array<i64: 16, 32>}, {pipeline_mode = #tpu.pipeline_mode<synchronous>, transform_indices = @transform_1, window_bounds = array<i64: 32, 64>}, {pipeline_mode = #tpu.pipeline_mode<synchronous>, transform_indices = @transform_2, window_bounds = array<i64: 1, 64>}, {transform_indices = @transform_3, window_bounds = array<i64: 64, 128>}, {transform_indices = @transform_4, window_bounds = array<i64: 16, 128>}]} {
    %c0_i32 = arith.constant 0 : i32
    %0 = arith.cmpi eq, %arg1, %c0_i32 : i32
    %1 = arith.extui %0 : i1 to i32
    %c0_i32_0 = arith.constant 0 : i32
    %2 = arith.cmpi ne, %1, %c0_i32_0 : i32
    scf.if %2 {
      %c0_6 = arith.constant 0 : index
      %c0_7 = arith.constant 0 : index
      %7 = vector.load %arg2[%c0_6, %c0_7] : memref<16x32xf32, #tpu.memory_space<vmem>>, vector<16x32xf32>
      %c0_8 = arith.constant 0 : index
      %c0_9 = arith.constant 0 : index
      %8 = vector.load %arg3[%c0_8, %c0_9] : memref<32x64xf32, #tpu.memory_space<vmem>>, vector<32x64xf32>
      %cst_10 = arith.constant dense<0.000000e+00> : vector<16x64xf32>
      %9 = tpu.matmul %7, %8, %cst_10 {dimension_numbers = #tpu.dot_dimension_numbers<[1], [0], [0], [1], [0, 0, 1, 1], [], []>} : vector<16x32xf32>, vector<32x64xf32>, vector<16x64xf32> -> vector<16x64xf32>
      %c0_11 = arith.constant 0 : index
      %c0_12 = arith.constant 0 : index
      %10 = vector.load %arg4[%c0_11, %c0_12] : memref<1x64xf32, #tpu.memory_space<vmem>>, vector<1x64xf32>
      %11 = vector.broadcast %10 : vector<1x64xf32> to vector<16x64xf32>
      %12 = arith.addf %9, %11 : vector<16x64xf32>
      %cst_13 = arith.constant 0.000000e+00 : f32
      %13 = vector.broadcast %cst_13 : f32 to vector<16x64xf32>
      %14 = arith.cmpf ogt, %12, %13 : vector<16x64xf32>
      %cst_14 = arith.constant 0.00999999977 : f32
      %15 = vector.broadcast %cst_14 : f32 to vector<16x64xf32>
      %16 = arith.mulf %15, %12 : vector<16x64xf32>
      %17 = arith.select %14, %12, %16 : vector<16x64xi1>, vector<16x64xf32>
      %c0_15 = arith.constant 0 : index
      %c0_16 = arith.constant 0 : index
      %18 = vector.load %arg7[%c0_15, %c0_16] : memref<16x64xf32, #tpu.memory_space<vmem>>, vector<16x64xf32>
      tpu.vector_store %arg7[%c0_15, %c0_16], %17 {strides = array<i32>} : memref<16x64xf32, #tpu.memory_space<vmem>>, vector<16x64xf32>,
    } else {
    }
    %c0 = arith.constant 0 : index
    %c0_1 = arith.constant 0 : index
    %3 = vector.load %arg7[%c0, %c0_1] : memref<16x64xf32, #tpu.memory_space<vmem>>, vector<16x64xf32>
    %c0_2 = arith.constant 0 : index
    %c0_3 = arith.constant 0 : index
    %4 = vector.load %arg5[%c0_2, %c0_3] : memref<64x128xf32, #tpu.memory_space<vmem>>, vector<64x128xf32>
    %cst = arith.constant dense<0.000000e+00> : vector<16x128xf32>
    %5 = tpu.matmul %3, %4, %cst {dimension_numbers = #tpu.dot_dimension_numbers<[1], [0], [0], [1], [0, 0, 1, 1], [], []>} : vector<16x64xf32>, vector<64x128xf32>, vector<16x128xf32> -> vector<16x128xf32>
    %c0_4 = arith.constant 0 : index
    %c0_5 = arith.constant 0 : index
    %6 = vector.load %arg6[%c0_4, %c0_5] : memref<16x128xf32, #tpu.memory_space<vmem>>, vector<16x128xf32>
    tpu.vector_store %arg6[%c0_4, %c0_5], %5 {strides = array<i32>} : memref<16x128xf32, #tpu.memory_space<vmem>>, vector<16x128xf32>,
    return
  }
  func.func @transform_0(%arg0: i32, %arg1: i32) -> (i32, i32) {
    %c0_i32 = arith.constant 0 : i32
    %c0_i32_0 = arith.constant 0 : i32
    return %arg0, %c0_i32 : i32, i32
  }
  func.func @transform_1(%arg0: i32, %arg1: i32) -> (i32, i32) {
    %c0_i32 = arith.constant 0 : i32
    %c0_i32_0 = arith.constant 0 : i32
    %c0_i32_1 = arith.constant 0 : i32
    return %c0_i32, %c0_i32_0 : i32, i32
  }
  func.func @transform_2(%arg0: i32, %arg1: i32) -> (i32, i32) {
    %c0_i32 = arith.constant 0 : i32
    %c0_i32_0 = arith.constant 0 : i32
    %c0_i32_1 = arith.constant 0 : i32
    return %c0_i32, %c0_i32_0 : i32, i32
  }
  func.func @transform_3(%arg0: i32, %arg1: i32) -> (i32, i32) {
    %c0_i32 = arith.constant 0 : i32
    %c0_i32_0 = arith.constant 0 : i32
    return %c0_i32, %arg1 : i32, i32
  }
  func.func @transform_4(%arg0: i32, %arg1: i32) -> (i32, i32) {
    %c0_i32 = arith.constant 0 : i32
    return %arg0, %arg1 : i32, i32
  }
}

</mosaic_0001>

<llo_original>
// kernel: tpu_custom_call.1
$region0: #{tpu_custom_call.1}
  #allocation0 [shape = 'u32[]', space=smem, size = 0x4, offset = 0x4, fixed_abs, tag = 'smem constant byte address 0x4 - core index']
  #allocation1 [shape = 'u32[72,128]{1,0:T(1,128)}', space=vmem, size = 0x9000, scoped, tag = 'internal scratch']
  #allocation2 [shape = 'f32[16,64]{1,0:T(8,128)}', space=vmem, size = 0x2000, scoped, tag = 'scratch operand']
  %s0 = inlined_call_operand.hbm [shape: f32[16,32], index: 0, kind: input, shape index: {}]
  %s1 = inlined_call_operand.hbm [shape: f32[32,64], index: 1, kind: input, shape index: {}]
  %s2 = inlined_call_operand.vmem [shape: f32[1,64], index: 2, kind: input, shape index: {}]
  %s3 = inlined_call_operand.hbm [shape: f32[64,128], index: 3, kind: input, shape index: {}]
  %s4 = inlined_call_operand.hbm [shape: f32[16,128], index: 4, kind: output, shape index: {}]
  %s5 = sld [smem:[#allocation0]]
  $region42: #{tpu_custom_call.1} parent=0
    _
  %s7 = ssub.s32 1, %s5
  %s8 = scalar_select 0, %s7, %s5
  $region1: #{tpu_custom_call.1} parent=0
    #allocation3 [shape = 'u8[8192]{0}', space=vmem, size = 0x2000, scoped, tag = 'input window, operand 0, single buffered']
    #allocation4 [shape = 's32[1]{0}', space=sflag, size = 0x4, scoped, tag = 'scoped memory for tpu_custom_call.1']
    #allocation5 [shape = 's32[1]{0}', space=sflag, size = 0x4, scoped, tag = 'scoped memory for tpu_custom_call.1']
    #allocation6 [shape = 'u8[16384]{0}', space=vmem, size = 0x4000, scoped, tag = 'input window, operand 1, single buffered']
    #allocation7 [shape = 's32[1]{0}', space=sflag, size = 0x4, scoped, tag = 'scoped memory for tpu_custom_call.1']
    #allocation8 [shape = 'u8[32768]{0}', space=vmem, size = 0x8000, scoped, tag = 'input window, operand 3, single buffered']
    #allocation9 [shape = 'u8[8192]{0}', space=vmem, size = 0x2000, scoped, tag = 'output window, operand 0, single buffered']
    %9 = vsyncpa [#allocation4], 0
    %10 = vsyncpa [#allocation7], 0
    %11 = vsyncpa [#allocation5], 0
    // Predicated region
    $region2: #{tpu_custom_call.1} parent=1 // pred_check
      _
    $region3: #{tpu_custom_call.1} parent=1 // pred_check_branch
      %13 = sbr.rel (0) target = $region5
    $region4: #{tpu_custom_call.1} parent=1 // pred_region
      %15 = vsyncadd [#allocation4], 0
      %s16 = sshll.u32 %s0, 4
      %s17 = int_to_ptr.hbm [resolvable:$true] %s16
      %s18 = sshll.u32 [#allocation3], 4
      %s19 = int_to_ptr.vmem [resolvable:$true] %s18
      %24 = dma.hbm_to_vmem [thread:$0]  %s17, 256, %s19, [#allocation4], 128, 128, 8
    $region5: #{tpu_custom_call.1} parent=1 // pred_fallthru
      _
    // Predicated region
    $region6: #{tpu_custom_call.1} parent=1 // pred_check
      _
    $region7: #{tpu_custom_call.1} parent=1 // pred_check_branch
      %26 = sbr.rel (0) target = $region9
    $region8: #{tpu_custom_call.1} parent=1 // pred_region
      %28 = vsyncadd [#allocation7], 0
      %s29 = sshll.u32 %s1, 4
      %s30 = int_to_ptr.hbm [resolvable:$true] %s29
      %s31 = sshll.u32 [#allocation6], 4
      %s32 = int_to_ptr.vmem [resolvable:$true] %s31
      %37 = dma.hbm_to_vmem [thread:$0]  %s30, 512, %s32, [#allocation7], 128, 128, 8
    $region9: #{tpu_custom_call.1} parent=1 // pred_fallthru
      _
    // Predicated region
    $region10: #{tpu_custom_call.1} parent=1 // pred_check
      _
    $region11: #{tpu_custom_call.1} parent=1 // pred_check_branch
      %39 = sbr.rel (0) target = $region13
    $region12: #{tpu_custom_call.1} parent=1 // pred_region
      _
    $region13: #{tpu_custom_call.1} parent=1 // pred_fallthru
      _
    // Predicated region
    $region14: #{tpu_custom_call.1} parent=1 // pred_check
      _
    $region15: #{tpu_custom_call.1} parent=1 // pred_check_branch
      %41 = sbr.rel (0) target = $region17
    $region16: #{tpu_custom_call.1} parent=1 // pred_region
      %43 = vsyncadd [#allocation7], 0
      %s44 = sshll.u32 %s3, 4
      %s45 = int_to_ptr.hbm [resolvable:$true] %s44
      %s46 = sshll.u32 [#allocation8], 4
      %s47 = int_to_ptr.vmem [resolvable:$true] %s46
      %52 = dma.hbm_to_vmem [thread:$0]  %s45, 1024, %s47, [#allocation7], 128, 128, 8
    $region17: #{tpu_custom_call.1} parent=1 // pred_fallthru
      _
    // Predicated region
    $region18: #{tpu_custom_call.1} parent=1 // pred_check
      _
    $region19: #{tpu_custom_call.1} parent=1 // pred_check_branch
      %54 = sbr.rel (0) target = $region21
    $region20: #{tpu_custom_call.1} parent=1 // pred_region
      %56 = dma.done [#allocation4], 256
    $region21: #{tpu_custom_call.1} parent=1 // pred_fallthru
      _
    // Predicated region
    $region22: #{tpu_custom_call.1} parent=1 // pred_check
      _
    $region23: #{tpu_custom_call.1} parent=1 // pred_check_branch
      %58 = sbr.rel (0) target = $region25
    $region24: #{tpu_custom_call.1} parent=1 // pred_region
      %60 = dma.done [#allocation7], 512
    $region25: #{tpu_custom_call.1} parent=1 // pred_fallthru
      _
    // Predicated region
    $region26: #{tpu_custom_call.1} parent=1 // pred_check
      _
    $region27: #{tpu_custom_call.1} parent=1 // pred_check_branch
      %62 = sbr.rel (0) target = $region29
    $region28: #{tpu_custom_call.1} parent=1 // pred_region
      %64 = dma.done [#allocation7], 1024
    $region29: #{tpu_custom_call.1} parent=1 // pred_fallthru
      _
    %p65 = scmp.eq.s32.totalorder 0, 0
    // Predicated region
    $region30: #{tpu_custom_call.1} parent=1 // pred_check
      %p66 = pneg %p65
    $region31: #{tpu_custom_call.1} parent=1 // pred_check_branch
      %68 = sbr.rel (%p66) target = $region33
    $region32: #{tpu_custom_call.1} parent=1 // pred_region
      %v69 = vld [vmem:[#allocation3] sm:$0xff]
      %v70 = vld [vmem:[#allocation3 + $0x8] sm:$0xff]
      %v71 = vld [vmem:[#allocation6] sm:$0xff]
      %v72 = vld [vmem:[#allocation6 + $0x8] sm:$0xff]
      %v73 = vld [vmem:[#allocation6 + $0x10] sm:$0xff]
      %v74 = vld [vmem:[#allocation6 + $0x18] sm:$0xff]
      %v75 = vld [vmem:[%s2] sm:$0x1]
      %v77 = vperm.slane %v75, 0
      %vm79 = vcmask 261120
      %v81 = vsel %vm79, %v69, 0
      %v84 = vsel %vm79, %v70, 0
      %86 = vmatpush.msra.mxu0 0.0
      %87 = vmatpush.msra.mxu0 0.0
      %88 = vmatpush.msra.mxu0 0.0
      %89 = vmatpush.msra.mxu0 0.0
      %90 = vmatpush.msra.mxu0 0.0
      %91 = vmatpush.msra.mxu0 0.0
      %92 = vmatpush.msra.mxu0 0.0
      %93 = vmatpush.msra.mxu0 0.0
      %94 = vmatpush.msra.mxu0 0.0
      %95 = vmatpush.msra.mxu0 0.0
      %96 = vmatpush.msra.mxu0 0.0
      %97 = vmatpush.msra.mxu0 0.0
      %98 = vmatpush.msra.mxu0 %v74
      %99 = vmatpush.msra.mxu0 %v73
      %100 = vmatpush.msra.mxu0 %v72
      %101 = vmatpush.msra.mxu0 %v71
      %102 = vmatmul.f32.gmra.mxu0 %v81
      %v103 = vpop.f32.mrf.mxu0
      %v104 = vadd.f32 %v77, %v103
      %105 = vmatmul.f32.gmra.mxu0 %v84
      %v106 = vpop.f32.mrf.mxu0
      %v107 = vadd.f32 %v77, %v106
      %108 = vdwg.mxu0
      %vm109 = vcmp.gt.f32.partialorder %v104, 0.0
      %vm110 = vcmp.gt.f32.partialorder %v107, 0.0
      %v111 = vmul.f32 %v104, 0.01
      %v112 = vmul.f32 %v107, 0.01
      %v113 = vsel %vm109, %v104, %v111
      %v114 = vsel %vm110, %v107, %v112
      %vm115 = vcmask 523264
      %116 = vst.msk [vmem:[#allocation2] sm:$0xff] %vm115, %v113
      %117 = vst.msk [vmem:[#allocation2 + $0x8] sm:$0xff] %vm115, %v114
    $region33: #{tpu_custom_call.1} parent=1 // pred_fallthru
      _
    %v118 = vld [vmem:[#allocation2] sm:$0xff]
    %v119 = vld [vmem:[#allocation2 + $0x8] sm:$0xff]
    %v120 = vld [vmem:[#allocation8] sm:$0xff]
    %v121 = vld [vmem:[#allocation8 + $0x8] sm:$0xff]
    %v122 = vld [vmem:[#allocation8 + $0x10] sm:$0xff]
    %v123 = vld [vmem:[#allocation8 + $0x18] sm:$0xff]
    %v124 = vld [vmem:[#allocation8 + $0x20] sm:$0xff]
    %v125 = vld [vmem:[#allocation8 + $0x28] sm:$0xff]
    %v126 = vld [vmem:[#allocation8 + $0x30] sm:$0xff]
    %v127 = vld [vmem:[#allocation8 + $0x38] sm:$0xff]
    %vm128 = vcmask 523264
    %v130 = vsel %vm128, %v118, 0
    %v133 = vsel %vm128, %v119, 0
    %135 = vmatpush.msra.mxu0 0.0
    %136 = vmatpush.msra.mxu0 0.0
    %137 = vmatpush.msra.mxu0 0.0
    %138 = vmatpush.msra.mxu0 0.0
    %139 = vmatpush.msra.mxu0 0.0
    %140 = vmatpush.msra.mxu0 0.0
    %141 = vmatpush.msra.mxu0 0.0
    %142 = vmatpush.msra.mxu0 0.0
    %143 = vmatpush.msra.mxu0 %v127
    %144 = vmatpush.msra.mxu0 %v126
    %145 = vmatpush.msra.mxu0 %v125
    %146 = vmatpush.msra.mxu0 %v124
    %147 = vmatpush.msra.mxu0 %v123
    %148 = vmatpush.msra.mxu0 %v122
    %149 = vmatpush.msra.mxu0 %v121
    %150 = vmatpush.msra.mxu0 %v120
    %151 = vmatmul.f32.gmra.mxu0 %v130
    %v152 = vpop.f32.mrf.mxu0
    %v153 = vadd.f32 0.0, %v152
    %154 = vmatmul.f32.gmra.mxu0 %v133
    %v155 = vpop.f32.mrf.mxu0
    %v156 = vadd.f32 0.0, %v155
    %157 = vdwg.mxu0
    %158 = vst [vmem:[#allocation9] sm:$0xff] %v153
    %159 = vst [vmem:[#allocation9 + $0x8] sm:$0xff] %v156
    // Predicated region
    $region34: #{tpu_custom_call.1} parent=1 // pred_check
      _
    $region35: #{tpu_custom_call.1} parent=1 // pred_check_branch
      %161 = sbr.rel (0) target = $region37
    $region36: #{tpu_custom_call.1} parent=1 // pred_region
      %163 = vsyncadd [#allocation5], 0
      %s164 = sshll.u32 [#allocation9], 4
      %s165 = int_to_ptr.vmem [resolvable:$true] %s164
      %s166 = sshll.u32 %s4, 4
      %s167 = int_to_ptr.hbm [resolvable:$true] %s166
      %172 = dma.vmem_to_hbm [thread:$0]  %s165, 256, %s167, [#allocation5], 128, 128, 8
    $region37: #{tpu_custom_call.1} parent=1 // pred_fallthru
      _
    // Predicated region
    $region38: #{tpu_custom_call.1} parent=1 // pred_check
      _
    $region39: #{tpu_custom_call.1} parent=1 // pred_check_branch
      %174 = sbr.rel (0) target = $region41
    $region40: #{tpu_custom_call.1} parent=1 // pred_region
      %176 = dma.done [#allocation5], 256
    $region41: #{tpu_custom_call.1} parent=1 // pred_fallthru
      _
    %177 = vsyncpa [#allocation4], 1
    %178 = vsyncpa [#allocation7], 1
    %179 = vsyncpa [#allocation5], 1

</llo_original>
